<compile_context>
chip_gen: v7x
topology: tpu7x:2x2x1
jax: 0.10.0
libtpu: 0.0.40
codegen_flags: <defaults>
</compile_context>

<pallas_src>
import functools

import jax
import jax.numpy as jnp
from jax import lax
from jax.experimental import pallas as pl
from jax.experimental.pallas import tpu as pltpu

EPS = 1e-8
PI = 0.95
RSV_DIM = 1
TAU = 1.0  # tau only rescales gumbel-softmax logits; the hard forward value is unaffected


def _sum_all(v):
    """Full reduction of a 2-D array to shape (1, 1), staying >= 2-D throughout."""
    return jnp.sum(jnp.sum(v, axis=-1, keepdims=True), axis=0, keepdims=True)


def _vq_kernel(x_ref, g_ref, w_ref, b_ref, sl_ref, e_ref, esq_ref, pv_ref,
               q_ref, kld_ref, sq_ref, *, d):
    x = x_ref[0]                                    # [C, TN]   (pixels on lanes)
    g = g_ref[0]                                    # [D, TN]
    tn = x.shape[-1]

    # Fused 1x1 convs: rows [0, D) -> feat, rows [D, 2D) -> pre-shifted p_vnd.
    y = jnp.dot(w_ref[...], x, preferred_element_type=jnp.float32) + b_ref[...]
    feat = y[:d, :]                                 # [D, TN]
    p_shift = y[d:, :]                              # [D, TN], row j == p_vnd[:, j+1]

    row_d = lax.broadcasted_iota(jnp.int32, (d, tn), 0)
    row_d_f = row_d.astype(jnp.float32)
    last = row_d == d - 1

    # beta = sigmoid(clip(p_vnd[..., RSV_DIM:], -5, 5)); synthetic last row forced to 0.
    sig = 1.0 / (1.0 + jnp.exp(-jnp.clip(p_shift, -5.0, 5.0)))
    beta_f = jnp.where(last, 0.0, sig)

    # qv[j] = (prod_{k<j} beta[k]) * (1 - beta[j])  (== cat([1,cumprod(beta)])*cat([1-beta,1]))
    # Exclusive cumprod over the 8-row sublane axis via exp(strict_lower @ log(beta)).
    log_beta = jnp.log(jnp.where(last, 1.0, beta_f))
    ecp = jnp.exp(jnp.dot(sl_ref[...], log_beta, preferred_element_type=jnp.float32))
    qv = ecp * (1.0 - beta_f)

    # Hard gumbel-softmax forward value: one-hot at m = argmax(qv + g) (first index on ties).
    # The reference's cumsum-based mask reduces analytically to s_vnd[j] = (j <= m).
    z = qv + g
    zmax = jnp.max(z, axis=0, keepdims=True)
    m = jnp.min(jnp.where(z == zmax, row_d_f, float(d)), axis=0, keepdims=True)   # [1, TN]
    s_vnd = (row_d_f <= m).astype(jnp.float32)

    # TODO(synk): the reference's kld einsum has no operands and the forward calls
    # exit() before it; we implement the intended VND KL: mean_n sum_d qv*log(qv/pv+EPS).
    kld_part = _sum_all(qv * jnp.log(qv / pv_ref[...] + EPS))

    latents = feat * s_vnd                           # [D, TN]

    # Codebook lookup: ||l||^2 + ||e||^2 - 2 e.l, argmin over K, one-hot matmul.
    e = e_ref[...]                                   # [K, D]
    k = e.shape[0]
    cross = jnp.dot(e, latents, preferred_element_type=jnp.float32)       # [K, TN]
    l_sq = jnp.sum(latents * latents, axis=0, keepdims=True)              # [1, TN]
    dist = l_sq + esq_ref[...] - 2.0 * cross                              # [K, TN]

    row_k_f = lax.broadcasted_iota(jnp.int32, (k, tn), 0).astype(jnp.float32)
    dmin = jnp.min(dist, axis=0, keepdims=True)
    ind = jnp.min(jnp.where(dist == dmin, row_k_f, float(k)), axis=0, keepdims=True)
    one_hot = (row_k_f == ind).astype(jnp.float32)                        # [K, TN]
    quant = lax.dot_general(e, one_hot, (((0,), (0,)), ((), ())),
                            preferred_element_type=jnp.float32)           # [D, TN]

    diff = quant - latents

    # Straight-through: forward value of latents + (quant - latents).detach() == quant.
    q_ref[0] = quant
    kld_ref[0, 0] = kld_part
    sq_ref[0, 0] = _sum_all(diff * diff)


def _pick_tile(hw, tile_n):
    """Largest pixel tile <= tile_n that divides H*W and is lane-legal."""
    tn = min(tile_n, hw)
    while tn > 1:
        if hw % tn == 0 and (tn == hw or tn % 128 == 0):
            return tn
        tn -= 1
    return hw


def vector_quantizer_forward(emb, params, gumbel, *, beta=0.25, tile_n=4096):
    """emb: NCHW [B, C, H, W]; gumbel: [B, D, H*W] iid Gumbel(0,1) noise.

    Returns (quantized NCHW [B, D, H, W], scalar vq_loss)."""
    w_enc = params["w_enc"]        # [C, D]
    b_enc = params["b_enc"]        # [D]
    w_p = params["w_p"]            # [C, D]
    b_p = params["b_p"]            # [D]
    e = params["embedding"]        # [K, D]
    pv = params["pv"]              # [D]

    B, C, H, W = emb.shape
    K, D = e.shape
    HW = H * W
    x = emb.reshape(B, C, HW).astype(jnp.float32)   # no data movement from NCHW
    tn = _pick_tile(HW, tile_n)
    assert HW % tn == 0
    nT = HW // tn

    # Fold the RSV_DIM shift of p_vnd into the conv weights (row j of the shifted
    # projection is the sigmoid input for beta[j] = sigmoid(p_vnd[j+1]); last row unused).
    wp_shift = jnp.concatenate([w_p[:, RSV_DIM:], jnp.zeros((C, RSV_DIM), jnp.float32)], axis=1)
    bp_shift = jnp.concatenate([b_p[RSV_DIM:], jnp.zeros((RSV_DIM,), jnp.float32)])
    w_cat_t = jnp.concatenate([w_enc, wp_shift], axis=1).T            # [2D, C]
    b_cat = jnp.concatenate([b_enc, bp_shift]).reshape(2 * D, 1)      # [2D, 1]

    # Loop-invariant small constants, built once host-side.
    strict_l = (jnp.arange(D)[:, None] > jnp.arange(D)[None, :]).astype(jnp.float32)  # [D, D]
    e_sq = jnp.sum(e * e, axis=1, keepdims=True)                      # [K, 1]
    pv2 = pv.reshape(D, 1)                                            # [D, 1]

    kernel = functools.partial(_vq_kernel, d=D)
    quant, kld_parts, sq_parts = pl.pallas_call(
        kernel,
        out_shape=(
            jax.ShapeDtypeStruct((B, D, HW), jnp.float32),            # quantized (NCHW-flat)
            jax.ShapeDtypeStruct((B, nT, 1, 1), jnp.float32),         # kld partial sums
            jax.ShapeDtypeStruct((B, nT, 1, 1), jnp.float32),         # squared-error partials
        ),
        grid_spec=pltpu.PrefetchScalarGridSpec(
            num_scalar_prefetch=0,
            grid=(B, nT),
            in_specs=[
                pl.BlockSpec((1, C, tn), lambda b, i: (b, 0, i)),     # x tile       [1, C, TN]
                pl.BlockSpec((1, D, tn), lambda b, i: (b, 0, i)),     # gumbel tile  [1, D, TN]
                pl.BlockSpec((2 * D, C), lambda b, i: (0, 0)),        # fused conv W [2D, C]
                pl.BlockSpec((2 * D, 1), lambda b, i: (0, 0)),        # fused bias   [2D, 1]
                pl.BlockSpec((D, D), lambda b, i: (0, 0)),            # strict-lower mask
                pl.BlockSpec((K, D), lambda b, i: (0, 0)),            # embedding    [K, D]
                pl.BlockSpec((K, 1), lambda b, i: (0, 0)),            # ||e||^2      [K, 1]
                pl.BlockSpec((D, 1), lambda b, i: (0, 0)),            # pv           [D, 1]
            ],
            out_specs=(
                pl.BlockSpec((1, D, tn), lambda b, i: (b, 0, i)),     # lane-dense output tile
                pl.BlockSpec((1, 1, 1, 1), lambda b, i: (b, i, 0, 0)),
                pl.BlockSpec((1, 1, 1, 1), lambda b, i: (b, i, 0, 0)),
            ),
        ),
        compiler_params=pltpu.CompilerParams(
            dimension_semantics=("parallel", "parallel")),
    )(x, gumbel, w_cat_t, b_cat, strict_l, e, e_sq, pv2)

    n_total = B * HW
    kld = jnp.sum(kld_parts) / n_total
    mse = jnp.sum(sq_parts) / (n_total * D)
    # commitment_loss and embedding_loss have the same forward value (mse)
    vq_loss = (mse + kld) * beta + mse

    quantized = quant.reshape(B, D, H, W)            # already NCHW; no transpose pass
    return quantized, vq_loss


def init_params(key, in_channels, num_embeddings, embedding_dim):
    C, K, D = in_channels, num_embeddings, embedding_dim
    k1, k2, k3, k4, k5 = jax.random.split(key, 5)
    w_enc = 0.1 * jax.random.normal(k1, (C, D), jnp.float32)
    b_enc = 0.1 * jax.random.normal(k2, (D,), jnp.float32)
    w_p = 0.1 * jax.random.normal(k3, (C, D), jnp.float32)
    b_p = 0.1 * jax.random.normal(k4, (D,), jnp.float32)
    emb_w = jax.random.uniform(k5, (K, D), jnp.float32, minval=-1.0 / K, maxval=1.0 / K)
    Pi = PI * jnp.ones((D - RSV_DIM,), jnp.float32)
    pv = (jnp.concatenate([jnp.ones((1,), jnp.float32), jnp.cumprod(Pi)])
          * jnp.concatenate([1.0 - Pi, jnp.ones((1,), jnp.float32)]))
    return dict(w_enc=w_enc, b_enc=b_enc, w_p=w_p, b_p=b_p, embedding=emb_w, pv=pv)


if __name__ == "__main__":
    key = jax.random.PRNGKey(0)
    k_emb, k_par, k_gum = jax.random.split(key, 3)

    B, C, H, W = 2, 4, 16, 16        # input  emb: NCHW
    K, D = 16, 8                     # num_embeddings, embedding_dim

    emb = jax.random.normal(k_emb, (B, C, H, W), jnp.float32)
    params = init_params(k_par, C, K, D)
    # Gumbel noise for the hard gumbel-softmax, drawn deterministically host-side,
    # laid out [B, D, H*W] to match the kernel's lane-dense layout.
    gumbel = jax.random.gumbel(k_gum, (B, D, H * W), jnp.float32)

    quantized, vq_loss = vector_quantizer_forward(emb, params, gumbel, beta=0.25)
    jax.block_until_ready((quantized, vq_loss))

    assert quantized.shape == (B, D, H, W)
    assert quantized.dtype == jnp.float32
    assert vq_loss.shape == ()
    print("KERNEL_OK")
</pallas_src>

<mosaic_0001>
module attributes {stable_mosaic.version = 11 : i64} {
  func.func @_vq_kernel(%arg0: i32, %arg1: i32, %arg2: memref<1x4x256xf32, #tpu.memory_space<vmem>>, %arg3: memref<1x8x256xf32, #tpu.memory_space<vmem>>, %arg4: memref<16x4xf32, #tpu.memory_space<vmem>>, %arg5: memref<16x1xf32, #tpu.memory_space<vmem>>, %arg6: memref<8x8xf32, #tpu.memory_space<vmem>>, %arg7: memref<16x8xf32, #tpu.memory_space<vmem>>, %arg8: memref<16x1xf32, #tpu.memory_space<vmem>>, %arg9: memref<8x1xf32, #tpu.memory_space<vmem>>, %arg10: memref<1x8x256xf32, #tpu.memory_space<vmem>>, %arg11: memref<1x1x1x1xf32, #tpu.memory_space<vmem>>, %arg12: memref<1x1x1x1xf32, #tpu.memory_space<vmem>>) attributes {dimension_semantics = [#tpu.dimension_semantics<parallel>, #tpu.dimension_semantics<parallel>], iteration_bounds = array<i64: 2, 1>, scalar_prefetch = 0 : i64, scratch_operands = 0 : i64, tpu.core_type = #tpu.core_type<tc>, window_params = [{transform_indices = @transform_0, window_bounds = array<i64: 1, 4, 256>}, {transform_indices = @transform_1, window_bounds = array<i64: 1, 8, 256>}, {pipeline_mode = #tpu.pipeline_mode<synchronous>, transform_indices = @transform_2, window_bounds = array<i64: 16, 4>}, {pipeline_mode = #tpu.pipeline_mode<synchronous>, transform_indices = @transform_3, window_bounds = array<i64: 16, 1>}, {pipeline_mode = #tpu.pipeline_mode<synchronous>, transform_indices = @transform_4, window_bounds = array<i64: 8, 8>}, {pipeline_mode = #tpu.pipeline_mode<synchronous>, transform_indices = @transform_5, window_bounds = array<i64: 16, 8>}, {pipeline_mode = #tpu.pipeline_mode<synchronous>, transform_indices = @transform_6, window_bounds = array<i64: 16, 1>}, {pipeline_mode = #tpu.pipeline_mode<synchronous>, transform_indices = @transform_7, window_bounds = array<i64: 8, 1>}, {transform_indices = @transform_8, window_bounds = array<i64: 1, 8, 256>}, {transform_indices = @transform_9, window_bounds = array<i64: 1, 1, 1, 1>}, {transform_indices = @transform_10, window_bounds = array<i64: 1, 1, 1, 1>}]} {
    %c0 = arith.constant 0 : index
    %c0_0 = arith.constant 0 : index
    %c0_1 = arith.constant 0 : index
    %0 = vector.load %arg2[%c0, %c0_0, %c0_1] : memref<1x4x256xf32, #tpu.memory_space<vmem>>, vector<1x4x256xf32>
    %1 = vector.shape_cast %0 : vector<1x4x256xf32> to vector<4x256xf32>
    %c0_2 = arith.constant 0 : index
    %c0_3 = arith.constant 0 : index
    %c0_4 = arith.constant 0 : index
    %2 = vector.load %arg3[%c0_2, %c0_3, %c0_4] : memref<1x8x256xf32, #tpu.memory_space<vmem>>, vector<1x8x256xf32>
    %3 = vector.shape_cast %2 : vector<1x8x256xf32> to vector<8x256xf32>
    %c0_5 = arith.constant 0 : index
    %c0_6 = arith.constant 0 : index
    %4 = vector.load %arg4[%c0_5, %c0_6] : memref<16x4xf32, #tpu.memory_space<vmem>>, vector<16x4xf32>
    %cst = arith.constant dense<0.000000e+00> : vector<16x256xf32>
    %5 = tpu.matmul %4, %1, %cst {dimension_numbers = #tpu.dot_dimension_numbers<[1], [0], [0], [1], [0, 0, 1, 1], [], []>} : vector<16x4xf32>, vector<4x256xf32>, vector<16x256xf32> -> vector<16x256xf32>
    %c0_7 = arith.constant 0 : index
    %c0_8 = arith.constant 0 : index
    %6 = vector.load %arg5[%c0_7, %c0_8] : memref<16x1xf32, #tpu.memory_space<vmem>>, vector<16x1xf32>
    %7 = vector.broadcast %6 : vector<16x1xf32> to vector<16x256xf32>
    %8 = arith.addf %5, %7 : vector<16x256xf32>
    %9 = vector.extract_strided_slice %8 {offsets = [0, 0], sizes = [8, 256], strides = [1, 1]} : vector<16x256xf32> to vector<8x256xf32>
    %10 = vector.extract_strided_slice %8 {offsets = [8, 0], sizes = [8, 256], strides = [1, 1]} : vector<16x256xf32> to vector<8x256xf32>
    %11 = tpu.iota {dimensions = array<i32: 0>} : vector<8x256xi32>
    %12 = arith.sitofp %11 : vector<8x256xi32> to vector<8x256xf32>
    %c7_i32 = arith.constant 7 : i32
    %13 = vector.broadcast %c7_i32 : i32 to vector<8x256xi32>
    %14 = arith.cmpi eq, %11, %13 : vector<8x256xi32>
    %cst_9 = arith.constant -5.000000e+00 : f32
    %cst_10 = arith.constant 5.000000e+00 : f32
    %15 = vector.broadcast %cst_9 : f32 to vector<8x256xf32>
    %16 = arith.maximumf %15, %10 : vector<8x256xf32>
    %17 = vector.broadcast %cst_10 : f32 to vector<8x256xf32>
    %18 = arith.minimumf %17, %16 : vector<8x256xf32>
    %cst_11 = arith.constant 0.000000e+00 : f32
    %19 = vector.broadcast %cst_11 : f32 to vector<8x256xf32>
    %20 = arith.subf %19, %18 : vector<8x256xf32>
    %21 = math.exp %20 : vector<8x256xf32>
    %cst_12 = arith.constant 1.000000e+00 : f32
    %22 = vector.broadcast %cst_12 : f32 to vector<8x256xf32>
    %23 = arith.addf %22, %21 : vector<8x256xf32>
    %cst_13 = arith.constant 1.000000e+00 : f32
    %24 = vector.broadcast %cst_13 : f32 to vector<8x256xf32>
    %25 = arith.divf %24, %23 : vector<8x256xf32>
    %cst_14 = arith.constant 0.000000e+00 : f32
    %26 = vector.broadcast %cst_14 : f32 to vector<8x256xf32>
    %27 = arith.select %14, %26, %25 : vector<8x256xi1>, vector<8x256xf32>
    %cst_15 = arith.constant 1.000000e+00 : f32
    %28 = vector.broadcast %cst_15 : f32 to vector<8x256xf32>
    %29 = arith.select %14, %28, %27 : vector<8x256xi1>, vector<8x256xf32>
    %30 = math.log %29 : vector<8x256xf32>
    %c0_16 = arith.constant 0 : index
    %c0_17 = arith.constant 0 : index
    %31 = vector.load %arg6[%c0_16, %c0_17] : memref<8x8xf32, #tpu.memory_space<vmem>>, vector<8x8xf32>
    %cst_18 = arith.constant dense<0.000000e+00> : vector<8x256xf32>
    %32 = tpu.matmul %31, %30, %cst_18 {dimension_numbers = #tpu.dot_dimension_numbers<[1], [0], [0], [1], [0, 0, 1, 1], [], []>} : vector<8x8xf32>, vector<8x256xf32>, vector<8x256xf32> -> vector<8x256xf32>
    %33 = math.exp %32 : vector<8x256xf32>
    %cst_19 = arith.constant 1.000000e+00 : f32
    %34 = vector.broadcast %cst_19 : f32 to vector<8x256xf32>
    %35 = arith.subf %34, %27 : vector<8x256xf32>
    %36 = arith.mulf %33, %35 : vector<8x256xf32>
    %37 = arith.addf %36, %3 : vector<8x256xf32>
    %cst_20 = arith.constant dense<0xFF800000> : vector<256xf32>
    %38 = vector.multi_reduction <maximumf>, %37, %cst_20 [0] : vector<8x256xf32> to vector<256xf32>
    %39 = vector.shape_cast %38 : vector<256xf32> to vector<1x256xf32>
    %40 = vector.broadcast %39 : vector<1x256xf32> to vector<8x256xf32>
    %41 = arith.cmpf oeq, %37, %40 : vector<8x256xf32>
    %cst_21 = arith.constant 8.000000e+00 : f32
    %42 = vector.broadcast %cst_21 : f32 to vector<8x256xf32>
    %43 = arith.select %41, %12, %42 : vector<8x256xi1>, vector<8x256xf32>
    %cst_22 = arith.constant dense<0x7F800000> : vector<256xf32>
    %44 = vector.multi_reduction <minimumf>, %43, %cst_22 [0] : vector<8x256xf32> to vector<256xf32>
    %45 = vector.shape_cast %44 : vector<256xf32> to vector<1x256xf32>
    %46 = vector.broadcast %45 : vector<1x256xf32> to vector<8x256xf32>
    %47 = arith.cmpf ole, %12, %46 : vector<8x256xf32>
    %48 = arith.extui %47 : vector<8x256xi1> to vector<8x256xi32>
    %49 = arith.sitofp %48 : vector<8x256xi32> to vector<8x256xf32>
    %c0_23 = arith.constant 0 : index
    %c0_24 = arith.constant 0 : index
    %50 = vector.load %arg9[%c0_23, %c0_24] : memref<8x1xf32, #tpu.memory_space<vmem>>, vector<8x1xf32>
    %51 = vector.broadcast %50 : vector<8x1xf32> to vector<8x256xf32>
    %52 = arith.divf %36, %51 : vector<8x256xf32>
    %cst_25 = arith.constant 9.99999993E-9 : f32
    %53 = vector.broadcast %cst_25 : f32 to vector<8x256xf32>
    %54 = arith.addf %52, %53 : vector<8x256xf32>
    %55 = math.log %54 : vector<8x256xf32>
    %56 = arith.mulf %36, %55 : vector<8x256xf32>
    %cst_26 = arith.constant dense<0.000000e+00> : vector<8xf32>
    %57 = vector.multi_reduction <add>, %56, %cst_26 [1] : vector<8x256xf32> to vector<8xf32>
    %58 = vector.shape_cast %57 : vector<8xf32> to vector<8x1xf32>
    %cst_27 = arith.constant dense<0.000000e+00> : vector<1xf32>
    %59 = vector.multi_reduction <add>, %58, %cst_27 [0] : vector<8x1xf32> to vector<1xf32>
    %60 = vector.shape_cast %59 : vector<1xf32> to vector<1x1xf32>
    %61 = arith.mulf %9, %49 : vector<8x256xf32>
    %c0_28 = arith.constant 0 : index
    %c0_29 = arith.constant 0 : index
    %62 = vector.load %arg7[%c0_28, %c0_29] : memref<16x8xf32, #tpu.memory_space<vmem>>, vector<16x8xf32>
    %cst_30 = arith.constant dense<0.000000e+00> : vector<16x256xf32>
    %63 = tpu.matmul %62, %61, %cst_30 {dimension_numbers = #tpu.dot_dimension_numbers<[1], [0], [0], [1], [0, 0, 1, 1], [], []>} : vector<16x8xf32>, vector<8x256xf32>, vector<16x256xf32> -> vector<16x256xf32>
    %64 = arith.mulf %61, %61 : vector<8x256xf32>
    %cst_31 = arith.constant dense<0.000000e+00> : vector<256xf32>
    %65 = vector.multi_reduction <add>, %64, %cst_31 [0] : vector<8x256xf32> to vector<256xf32>
    %66 = vector.shape_cast %65 : vector<256xf32> to vector<1x256xf32>
    %c0_32 = arith.constant 0 : index
    %c0_33 = arith.constant 0 : index
    %67 = vector.load %arg8[%c0_32, %c0_33] : memref<16x1xf32, #tpu.memory_space<vmem>>, vector<16x1xf32>
    %68 = vector.broadcast %66 : vector<1x256xf32> to vector<16x256xf32>
    %69 = vector.broadcast %67 : vector<16x1xf32> to vector<16x256xf32>
    %70 = arith.addf %68, %69 : vector<16x256xf32>
    %cst_34 = arith.constant 2.000000e+00 : f32
    %71 = vector.broadcast %cst_34 : f32 to vector<16x256xf32>
    %72 = arith.mulf %71, %63 : vector<16x256xf32>
    %73 = arith.subf %70, %72 : vector<16x256xf32>
    %74 = tpu.iota {dimensions = array<i32: 0>} : vector<16x256xi32>
    %75 = arith.sitofp %74 : vector<16x256xi32> to vector<16x256xf32>
    %cst_35 = arith.constant dense<0x7F800000> : vector<256xf32>
    %76 = vector.multi_reduction <minimumf>, %73, %cst_35 [0] : vector<16x256xf32> to vector<256xf32>
    %77 = vector.shape_cast %76 : vector<256xf32> to vector<1x256xf32>
    %78 = vector.broadcast %77 : vector<1x256xf32> to vector<16x256xf32>
    %79 = arith.cmpf oeq, %73, %78 : vector<16x256xf32>
    %cst_36 = arith.constant 1.600000e+01 : f32
    %80 = vector.broadcast %cst_36 : f32 to vector<16x256xf32>
    %81 = arith.select %79, %75, %80 : vector<16x256xi1>, vector<16x256xf32>
    %cst_37 = arith.constant dense<0x7F800000> : vector<256xf32>
    %82 = vector.multi_reduction <minimumf>, %81, %cst_37 [0] : vector<16x256xf32> to vector<256xf32>
    %83 = vector.shape_cast %82 : vector<256xf32> to vector<1x256xf32>
    %84 = vector.broadcast %83 : vector<1x256xf32> to vector<16x256xf32>
    %85 = arith.cmpf oeq, %75, %84 : vector<16x256xf32>
    %86 = arith.extui %85 : vector<16x256xi1> to vector<16x256xi32>
    %87 = arith.sitofp %86 : vector<16x256xi32> to vector<16x256xf32>
    %cst_38 = arith.constant dense<0.000000e+00> : vector<8x256xf32>
    %88 = tpu.matmul %62, %87, %cst_38 {dimension_numbers = #tpu.dot_dimension_numbers<[0], [0], [1], [1], [0, 1, 1, 1], [], []>} : vector<16x8xf32>, vector<16x256xf32>, vector<8x256xf32> -> vector<8x256xf32>
    %89 = arith.subf %88, %61 : vector<8x256xf32>
    %c0_39 = arith.constant 0 : index
    %c0_40 = arith.constant 0 : index
    %c0_41 = arith.constant 0 : index
    %90 = vector.load %arg10[%c0_39, %c0_40, %c0_41] : memref<1x8x256xf32, #tpu.memory_space<vmem>>, vector<1x8x256xf32>
    %91 = vector.shape_cast %90 : vector<1x8x256xf32> to vector<8x256xf32>
    %92 = vector.shape_cast %88 : vector<8x256xf32> to vector<1x8x256xf32>
    tpu.vector_store %arg10[%c0_39, %c0_40, %c0_41], %92 {strides = array<i32>} : memref<1x8x256xf32, #tpu.memory_space<vmem>>, vector<1x8x256xf32>,
    %c0_42 = arith.constant 0 : index
    %c0_43 = arith.constant 0 : index
    %c0_44 = arith.constant 0 : index
    %c0_45 = arith.constant 0 : index
    %93 = vector.load %arg11[%c0_42, %c0_43, %c0_44, %c0_45] : memref<1x1x1x1xf32, #tpu.memory_space<vmem>>, vector<1x1x1x1xf32>
    %94 = vector.shape_cast %93 : vector<1x1x1x1xf32> to vector<1x1xf32>
    %95 = vector.shape_cast %60 : vector<1x1xf32> to vector<1x1x1x1xf32>
    tpu.vector_store %arg11[%c0_42, %c0_43, %c0_44, %c0_45], %95 {strides = array<i32>} : memref<1x1x1x1xf32, #tpu.memory_space<vmem>>, vector<1x1x1x1xf32>,
    %96 = arith.mulf %89, %89 : vector<8x256xf32>
    %cst_46 = arith.constant dense<0.000000e+00> : vector<8xf32>
    %97 = vector.multi_reduction <add>, %96, %cst_46 [1] : vector<8x256xf32> to vector<8xf32>
    %98 = vector.shape_cast %97 : vector<8xf32> to vector<8x1xf32>
    %cst_47 = arith.constant dense<0.000000e+00> : vector<1xf32>
    %99 = vector.multi_reduction <add>, %98, %cst_47 [0] : vector<8x1xf32> to vector<1xf32>
    %100 = vector.shape_cast %99 : vector<1xf32> to vector<1x1xf32>
    %c0_48 = arith.constant 0 : index
    %c0_49 = arith.constant 0 : index
    %c0_50 = arith.constant 0 : index
    %c0_51 = arith.constant 0 : index
    %101 = vector.load %arg12[%c0_48, %c0_49, %c0_50, %c0_51] : memref<1x1x1x1xf32, #tpu.memory_space<vmem>>, vector<1x1x1x1xf32>
    %102 = vector.shape_cast %101 : vector<1x1x1x1xf32> to vector<1x1xf32>
    %103 = vector.shape_cast %100 : vector<1x1xf32> to vector<1x1x1x1xf32>
    tpu.vector_store %arg12[%c0_48, %c0_49, %c0_50, %c0_51], %103 {strides = array<i32>} : memref<1x1x1x1xf32, #tpu.memory_space<vmem>>, vector<1x1x1x1xf32>,
    return
  }
  func.func @transform_0(%arg0: i32, %arg1: i32) -> (i32, i32, i32) {
    %c0_i32 = arith.constant 0 : i32
    %c0_i32_0 = arith.constant 0 : i32
    return %arg0, %c0_i32, %arg1 : i32, i32, i32
  }
  func.func @transform_1(%arg0: i32, %arg1: i32) -> (i32, i32, i32) {
    %c0_i32 = arith.constant 0 : i32
    %c0_i32_0 = arith.constant 0 : i32
    return %arg0, %c0_i32, %arg1 : i32, i32, i32
  }
  func.func @transform_2(%arg0: i32, %arg1: i32) -> (i32, i32) {
    %c0_i32 = arith.constant 0 : i32
    %c0_i32_0 = arith.constant 0 : i32
    %c0_i32_1 = arith.constant 0 : i32
    return %c0_i32, %c0_i32_0 : i32, i32
  }
  func.func @transform_3(%arg0: i32, %arg1: i32) -> (i32, i32) {
    %c0_i32 = arith.constant 0 : i32
    %c0_i32_0 = arith.constant 0 : i32
    %c0_i32_1 = arith.constant 0 : i32
    return %c0_i32, %c0_i32_0 : i32, i32
  }
  func.func @transform_4(%arg0: i32, %arg1: i32) -> (i32, i32) {
    %c0_i32 = arith.constant 0 : i32
    %c0_i32_0 = arith.constant 0 : i32
    %c0_i32_1 = arith.constant 0 : i32
    return %c0_i32, %c0_i32_0 : i32, i32
  }
  func.func @transform_5(%arg0: i32, %arg1: i32) -> (i32, i32) {
    %c0_i32 = arith.constant 0 : i32
    %c0_i32_0 = arith.constant 0 : i32
    %c0_i32_1 = arith.constant 0 : i32
    return %c0_i32, %c0_i32_0 : i32, i32
  }
  func.func @transform_6(%arg0: i32, %arg1: i32) -> (i32, i32) {
    %c0_i32 = arith.constant 0 : i32
    %c0_i32_0 = arith.constant 0 : i32
    %c0_i32_1 = arith.constant 0 : i32
    return %c0_i32, %c0_i32_0 : i32, i32
  }
  func.func @transform_7(%arg0: i32, %arg1: i32) -> (i32, i32) {
    %c0_i32 = arith.constant 0 : i32
    %c0_i32_0 = arith.constant 0 : i32
    %c0_i32_1 = arith.constant 0 : i32
    return %c0_i32, %c0_i32_0 : i32, i32
  }
  func.func @transform_8(%arg0: i32, %arg1: i32) -> (i32, i32, i32) {
    %c0_i32 = arith.constant 0 : i32
    %c0_i32_0 = arith.constant 0 : i32
    return %arg0, %c0_i32, %arg1 : i32, i32, i32
  }
  func.func @transform_9(%arg0: i32, %arg1: i32) -> (i32, i32, i32, i32) {
    %c0_i32 = arith.constant 0 : i32
    %c0_i32_0 = arith.constant 0 : i32
    %c0_i32_1 = arith.constant 0 : i32
    return %arg0, %arg1, %c0_i32, %c0_i32_0 : i32, i32, i32, i32
  }
  func.func @transform_10(%arg0: i32, %arg1: i32) -> (i32, i32, i32, i32) {
    %c0_i32 = arith.constant 0 : i32
    %c0_i32_0 = arith.constant 0 : i32
    %c0_i32_1 = arith.constant 0 : i32
    return %arg0, %arg1, %c0_i32, %c0_i32_0 : i32, i32, i32, i32
  }
}

</mosaic_0001>

<llo_original>
// kernel: tpu_custom_call.1
$region0: #{tpu_custom_call.1}
  #allocation0 [shape = 'u32[]', space=smem, size = 0x4, offset = 0x4, fixed_abs, tag = 'smem constant byte address 0x4 - core index']
  #allocation1 [shape = 'u32[144,128]{1,0:T(1,128)}', space=vmem, size = 0x12000, scoped, tag = 'internal scratch']
  %s0 = inlined_call_operand.vmem [shape: f32[2,4,256], index: 0, kind: input, shape index: {}]
  %s1 = inlined_call_operand.vmem [shape: f32[2,8,256], index: 1, kind: input, shape index: {}]
  %s2 = inlined_call_operand.vmem [shape: f32[16,4], index: 2, kind: input, shape index: {}]
  %s3 = inlined_call_operand.vmem [shape: f32[16,1], index: 3, kind: input, shape index: {}]
  %s4 = inlined_call_operand.vmem [shape: f32[8,8], index: 4, kind: input, shape index: {}]
  %s5 = inlined_call_operand.vmem [shape: f32[16,8], index: 5, kind: input, shape index: {}]
  %s6 = inlined_call_operand.vmem [shape: f32[16,1], index: 6, kind: input, shape index: {}]
  %s7 = inlined_call_operand.vmem [shape: f32[8,1], index: 7, kind: input, shape index: {}]
  %s8 = inlined_call_operand.hbm [shape: f32[2,8,256], index: 8, kind: output, shape index: {0}]
  %s9 = inlined_call_operand.vmem [shape: f32[2,1,1,1], index: 9, kind: output, shape index: {1}]
  %s10 = inlined_call_operand.vmem [shape: f32[2,1,1,1], index: 10, kind: output, shape index: {2}]
  %11 = xla_tuple %s8, %s9, %s10
  %s12 = sld [smem:[#allocation0]]
  $region81: #{tpu_custom_call.1} parent=0
    _
  %s14 = ssub.s32 1, %s12
  %s15 = scalar_select 0, %s14, %s12
  $region1: #{tpu_custom_call.1} parent=0
    #allocation2 [shape = 'u8[16384]{0}', space=vmem, size = 0x4000, scoped, tag = 'output window, operand 0']
    #allocation3 [shape = 's32[2]{0}', space=sflag, size = 0x8, scoped, tag = 'scoped memory for tpu_custom_call.1']
    %16 = vsyncpa [#allocation3], 0
    %s17 = scalar_lea.sflag [#allocation3], 1
    %18 = vsyncpa %s17, 0
    loop: start=0, step=1, limit=4
    $region2: #{tpu_custom_call.1} parent=1 // loop_pre_header
      _
    $region3: #{tpu_custom_call.1} parent=1 // loop_header
      %s20 = sphi 0, %s24
      %p21 = scmp.ge.s32.totalorder %s20, 4
      %s27 = sphi 0, %s39
      %s28 = sphi 0, %s35
      %s29 = sphi 0, %s27
      %s30 = sphi 0, %s28
      %s31 = sphi 0, %s29
      %s32 = sphi 0, %s30
      %s44 = sphi 0, %s46
      %s47 = sphi 0, %s44
      %s48 = sphi 0, %s47
      %s64 = sphi 0, %s48
      %s72 = sphi 0, %s74
      %s75 = sphi 0, %s72
      %s76 = sphi 0, %s75
      %s92 = sphi 0, %s76
      %s96 = sphi 0, %s96
      %s98 = sphi 0, %s96
      %s99 = sphi 0, %s98
      %s113 = sphi 0, %s99
      %s117 = sphi 0, %s117
      %s119 = sphi 0, %s117
      %s120 = sphi 0, %s119
      %s134 = sphi 0, %s120
      %s138 = sphi 0, %s138
      %s140 = sphi 0, %s138
      %s141 = sphi 0, %s140
      %s155 = sphi 0, %s141
      %s159 = sphi 0, %s159
      %s161 = sphi 0, %s159
      %s162 = sphi 0, %s161
      %s176 = sphi 0, %s162
      %s180 = sphi 0, %s180
      %s182 = sphi 0, %s180
      %s183 = sphi 0, %s182
      %s197 = sphi 0, %s183
      %s201 = sphi 0, %s201
      %s203 = sphi 0, %s201
      %s204 = sphi 0, %s203
      %s218 = sphi 0, %s204
      %s226 = sphi 0, %s228
      %s229 = sphi 0, %s226
      %s230 = sphi 0, %s229
      %s246 = sphi 0, %s230
      %s254 = sphi 0, %s256
      %s257 = sphi 0, %s254
      %s258 = sphi 0, %s257
      %s274 = sphi 0, %s258
      %s282 = sphi 0, %s284
      %s285 = sphi 0, %s282
      %s286 = sphi 0, %s285
      %s302 = sphi 0, %s286
    $region4: #{tpu_custom_call.1} parent=1 // loop_header_branch
      %23 = sbr.rel (%p21) target = $region8
    $region5: #{tpu_custom_call.1} parent=1 // loop_body
      %s25 = ssub.s32 %s20, 1
      %s26 = ssub.s32 %s20, 2
      %s33 = sadd.s32 1, %s28
      %p34 = scmp.ge.s32.totalorder %s33, 1
      %s35 = scalar_select %p34, 0, %s33
      %s36 = sadd.s32 1, %s27
      %s37 = scalar_select %p34, %s36, %s27
      %p38 = scmp.ge.s32.totalorder %s37, 2
      %s39 = scalar_select %p38, 0, %s37
      %s40 = ssub.s32 %s27, %s39
      %s41 = ssub.s32 %s28, %s35
      %s42 = sor.u32 %s40, %s41
      %p43 = scmp.eq.s32.totalorder %s42, 0
      %s45 = sadd.s32 %s44, 1
      %s46 = scalar_select %p43, %s44, %s45
      %p49 = pneg %p43
      %p50 = scmp.eq.s32.totalorder %s20, 1
      %p51 = por %p49, %p50
      %p52 = scmp.ne.s32.totalorder %s44, %s47
      %p53 = scmp.eq.s32.totalorder %s20, 0
      %p54 = por %p52, %p53
      %p55 = scmp.ne.s32.totalorder %s44, %s47
      %p56 = scmp.eq.s32.totalorder %s25, 1
      %p57 = por %p55, %p56
      %p58 = scmp.ne.s32.totalorder %s47, %s48
      %p59 = scmp.eq.s32.totalorder %s25, 0
      %p60 = por %p58, %p59
      %p61 = scmp.ne.s32.totalorder %s47, %s48
      %p62 = scmp.eq.s32.totalorder %s26, 1
      %p63 = por %p61, %p62
      %p65 = scmp.ne.s32.totalorder %s48, %s64
      %p66 = scmp.eq.s32.totalorder %s26, 0
      %p67 = por %p65, %p66
      %s68 = ssub.s32 %s27, %s39
      %s69 = ssub.s32 %s28, %s35
      %s70 = sor.u32 %s68, %s69
      %p71 = scmp.eq.s32.totalorder %s70, 0
      %s73 = sadd.s32 %s72, 1
      %s74 = scalar_select %p71, %s72, %s73
      %p77 = pneg %p71
      %p78 = scmp.eq.s32.totalorder %s20, 1
      %p79 = por %p77, %p78
      %p80 = scmp.ne.s32.totalorder %s72, %s75
      %p81 = scmp.eq.s32.totalorder %s20, 0
      %p82 = por %p80, %p81
      %p83 = scmp.ne.s32.totalorder %s72, %s75
      %p84 = scmp.eq.s32.totalorder %s25, 1
      %p85 = por %p83, %p84
      %p86 = scmp.ne.s32.totalorder %s75, %s76
      %p87 = scmp.eq.s32.totalorder %s25, 0
      %p88 = por %p86, %p87
      %p89 = scmp.ne.s32.totalorder %s75, %s76
      %p90 = scmp.eq.s32.totalorder %s26, 1
      %p91 = por %p89, %p90
      %p93 = scmp.ne.s32.totalorder %s76, %s92
      %p94 = scmp.eq.s32.totalorder %s26, 0
      %p95 = por %p93, %p94
      %s97 = sadd.s32 %s96, 1
      %p100 = scmp.eq.s32.totalorder %s20, 1
      %p101 = scmp.ne.s32.totalorder %s96, %s98
      %p102 = scmp.eq.s32.totalorder %s20, 0
      %p103 = por %p101, %p102
      %p104 = scmp.ne.s32.totalorder %s96, %s98
      %p105 = scmp.eq.s32.totalorder %s25, 1
      %p106 = por %p104, %p105
      %p107 = scmp.ne.s32.totalorder %s98, %s99
      %p108 = scmp.eq.s32.totalorder %s25, 0
      %p109 = por %p107, %p108
      %p110 = scmp.ne.s32.totalorder %s98, %s99
      %p111 = scmp.eq.s32.totalorder %s26, 1
      %p112 = por %p110, %p111
      %p114 = scmp.ne.s32.totalorder %s99, %s113
      %p115 = scmp.eq.s32.totalorder %s26, 0
      %p116 = por %p114, %p115
      %s118 = sadd.s32 %s117, 1
      %p121 = scmp.eq.s32.totalorder %s20, 1
      %p122 = scmp.ne.s32.totalorder %s117, %s119
      %p123 = scmp.eq.s32.totalorder %s20, 0
      %p124 = por %p122, %p123
      %p125 = scmp.ne.s32.totalorder %s117, %s119
      %p126 = scmp.eq.s32.totalorder %s25, 1
      %p127 = por %p125, %p126
      %p128 = scmp.ne.s32.totalorder %s119, %s120
      %p129 = scmp.eq.s32.totalorder %s25, 0
      %p130 = por %p128, %p129
      %p131 = scmp.ne.s32.totalorder %s119, %s120
      %p132 = scmp.eq.s32.totalorder %s26, 1
      %p133 = por %p131, %p132
      %p135 = scmp.ne.s32.totalorder %s120, %s134
      %p136 = scmp.eq.s32.totalorder %s26, 0
      %p137 = por %p135, %p136
      %s139 = sadd.s32 %s138, 1
      %p142 = scmp.eq.s32.totalorder %s20, 1
      %p143 = scmp.ne.s32.totalorder %s138, %s140
      %p144 = scmp.eq.s32.totalorder %s20, 0
      %p145 = por %p143, %p144
      %p146 = scmp.ne.s32.totalorder %s138, %s140
      %p147 = scmp.eq.s32.totalorder %s25, 1
      %p148 = por %p146, %p147
      %p149 = scmp.ne.s32.totalorder %s140, %s141
      %p150 = scmp.eq.s32.totalorder %s25, 0
      %p151 = por %p149, %p150
      %p152 = scmp.ne.s32.totalorder %s140, %s141
      %p153 = scmp.eq.s32.totalorder %s26, 1
      %p154 = por %p152, %p153
      %p156 = scmp.ne.s32.totalorder %s141, %s155
      %p157 = scmp.eq.s32.totalorder %s26, 0
      %p158 = por %p156, %p157
      %s160 = sadd.s32 %s159, 1
      %p163 = scmp.eq.s32.totalorder %s20, 1
      %p164 = scmp.ne.s32.totalorder %s159, %s161
      %p165 = scmp.eq.s32.totalorder %s20, 0
      %p166 = por %p164, %p165
      %p167 = scmp.ne.s32.totalorder %s159, %s161
      %p168 = scmp.eq.s32.totalorder %s25, 1
      %p169 = por %p167, %p168
      %p170 = scmp.ne.s32.totalorder %s161, %s162
      %p171 = scmp.eq.s32.totalorder %s25, 0
      %p172 = por %p170, %p171
      %p173 = scmp.ne.s32.totalorder %s161, %s162
      %p174 = scmp.eq.s32.totalorder %s26, 1
      %p175 = por %p173, %p174
      %p177 = scmp.ne.s32.totalorder %s162, %s176
      %p178 = scmp.eq.s32.totalorder %s26, 0
      %p179 = por %p177, %p178
      %s181 = sadd.s32 %s180, 1
      %p184 = scmp.eq.s32.totalorder %s20, 1
      %p185 = scmp.ne.s32.totalorder %s180, %s182
      %p186 = scmp.eq.s32.totalorder %s20, 0
      %p187 = por %p185, %p186
      %p188 = scmp.ne.s32.totalorder %s180, %s182
      %p189 = scmp.eq.s32.totalorder %s25, 1
      %p190 = por %p188, %p189
      %p191 = scmp.ne.s32.totalorder %s182, %s183
      %p192 = scmp.eq.s32.totalorder %s25, 0
      %p193 = por %p191, %p192
      %p194 = scmp.ne.s32.totalorder %s182, %s183
      %p195 = scmp.eq.s32.totalorder %s26, 1
      %p196 = por %p194, %p195
      %p198 = scmp.ne.s32.totalorder %s183, %s197
      %p199 = scmp.eq.s32.totalorder %s26, 0
      %p200 = por %p198, %p199
      %s202 = sadd.s32 %s201, 1
      %p205 = scmp.eq.s32.totalorder %s20, 1
      %p206 = scmp.ne.s32.totalorder %s201, %s203
      %p207 = scmp.eq.s32.totalorder %s20, 0
      %p208 = por %p206, %p207
      %p209 = scmp.ne.s32.totalorder %s201, %s203
      %p210 = scmp.eq.s32.totalorder %s25, 1
      %p211 = por %p209, %p210
      %p212 = scmp.ne.s32.totalorder %s203, %s204
      %p213 = scmp.eq.s32.totalorder %s25, 0
      %p214 = por %p212, %p213
      %p215 = scmp.ne.s32.totalorder %s203, %s204
      %p216 = scmp.eq.s32.totalorder %s26, 1
      %p217 = por %p215, %p216
      %p219 = scmp.ne.s32.totalorder %s204, %s218
      %p220 = scmp.eq.s32.totalorder %s26, 0
      %p221 = por %p219, %p220
      %s222 = ssub.s32 %s27, %s39
      %s223 = ssub.s32 %s28, %s35
      %s224 = sor.u32 %s222, %s223
      %p225 = scmp.eq.s32.totalorder %s224, 0
      %s227 = sadd.s32 %s226, 1
      %s228 = scalar_select %p225, %s226, %s227
      %p231 = pneg %p225
      %p232 = scmp.eq.s32.totalorder %s20, 1
      %p233 = por %p231, %p232
      %p234 = scmp.ne.s32.totalorder %s226, %s229
      %p235 = scmp.eq.s32.totalorder %s20, 0
      %p236 = por %p234, %p235
      %p237 = scmp.ne.s32.totalorder %s226, %s229
      %p238 = scmp.eq.s32.totalorder %s25, 1
      %p239 = por %p237, %p238
      %p240 = scmp.ne.s32.totalorder %s229, %s230
      %p241 = scmp.eq.s32.totalorder %s25, 0
      %p242 = por %p240, %p241
      %p243 = scmp.ne.s32.totalorder %s229, %s230
      %p244 = scmp.eq.s32.totalorder %s26, 1
      %p245 = por %p243, %p244
      %p247 = scmp.ne.s32.totalorder %s230, %s246
      %p248 = scmp.eq.s32.totalorder %s26, 0
      %p249 = por %p247, %p248
      %s250 = ssub.s32 %s27, %s39
      %s251 = ssub.s32 %s28, %s35
      %s252 = sor.u32 %s250, %s251
      %p253 = scmp.eq.s32.totalorder %s252, 0
      %s255 = sadd.s32 %s254, 1
      %s256 = scalar_select %p253, %s254, %s255
      %p259 = pneg %p253
      %p260 = scmp.eq.s32.totalorder %s20, 1
      %p261 = por %p259, %p260
      %p262 = scmp.ne.s32.totalorder %s254, %s257
      %p263 = scmp.eq.s32.totalorder %s20, 0
      %p264 = por %p262, %p263
      %p265 = scmp.ne.s32.totalorder %s254, %s257
      %p266 = scmp.eq.s32.totalorder %s25, 1
      %p267 = por %p265, %p266
      %p268 = scmp.ne.s32.totalorder %s257, %s258
      %p269 = scmp.eq.s32.totalorder %s25, 0
      %p270 = por %p268, %p269
      %p271 = scmp.ne.s32.totalorder %s257, %s258
      %p272 = scmp.eq.s32.totalorder %s26, 1
      %p273 = por %p271, %p272
      %p275 = scmp.ne.s32.totalorder %s258, %s274
      %p276 = scmp.eq.s32.totalorder %s26, 0
      %p277 = por %p275, %p276
      %s278 = ssub.s32 %s27, %s39
      %s279 = ssub.s32 %s28, %s35
      %s280 = sor.u32 %s278, %s279
      %p281 = scmp.eq.s32.totalorder %s280, 0
      %s283 = sadd.s32 %s282, 1
      %s284 = scalar_select %p281, %s282, %s283
      %p287 = pneg %p281
      %p288 = scmp.eq.s32.totalorder %s20, 1
      %p289 = por %p287, %p288
      %p290 = scmp.ne.s32.totalorder %s282, %s285
      %p291 = scmp.eq.s32.totalorder %s20, 0
      %p292 = por %p290, %p291
      %p293 = scmp.ne.s32.totalorder %s282, %s285
      %p294 = scmp.eq.s32.totalorder %s25, 1
      %p295 = por %p293, %p294
      %p296 = scmp.ne.s32.totalorder %s285, %s286
      %p297 = scmp.eq.s32.totalorder %s25, 0
      %p298 = por %p296, %p297
      %p299 = scmp.ne.s32.totalorder %s285, %s286
      %p300 = scmp.eq.s32.totalorder %s26, 1
      %p301 = por %p299, %p300
      %p303 = scmp.ne.s32.totalorder %s286, %s302
      %p304 = scmp.eq.s32.totalorder %s26, 0
      %p305 = por %p303, %p304
      %p306 = scmp.le.s32.totalorder 1, %s20
      %p307 = scmp.lt.s32.totalorder %s20, 3
      %p308 = pnand %p306, %p307
      %p309 = pneg %p308
      // Predicated region
      $region9: #{tpu_custom_call.1} parent=5 // pred_check
        _
      $region10: #{tpu_custom_call.1} parent=5 // pred_check_branch
        %311 = sbr.rel (%p308) target = $region12
      $region11: #{tpu_custom_call.1} parent=5 // pred_region
        %s312 = ssub.s32 %s20, 1
        // Predicated region
        $region13: #{tpu_custom_call.1} parent=11 // pred_check
          %p313 = pneg %p109
        $region14: #{tpu_custom_call.1} parent=11 // pred_check_branch
          %315 = sbr.rel (%p313) target = $region16
        $region15: #{tpu_custom_call.1} parent=11 // pred_region
          _
        $region16: #{tpu_custom_call.1} parent=11 // pred_fallthru
          _
        // Predicated region
        $region17: #{tpu_custom_call.1} parent=11 // pred_check
          %p316 = pneg %p130
        $region18: #{tpu_custom_call.1} parent=11 // pred_check_branch
          %318 = sbr.rel (%p316) target = $region20
        $region19: #{tpu_custom_call.1} parent=11 // pred_region
          _
        $region20: #{tpu_custom_call.1} parent=11 // pred_fallthru
          _
        // Predicated region
        $region21: #{tpu_custom_call.1} parent=11 // pred_check
          %p319 = pneg %p151
        $region22: #{tpu_custom_call.1} parent=11 // pred_check_branch
          %321 = sbr.rel (%p319) target = $region24
        $region23: #{tpu_custom_call.1} parent=11 // pred_region
          _
        $region24: #{tpu_custom_call.1} parent=11 // pred_fallthru
          _
        // Predicated region
        $region25: #{tpu_custom_call.1} parent=11 // pred_check
          %p322 = pneg %p172
        $region26: #{tpu_custom_call.1} parent=11 // pred_check_branch
          %324 = sbr.rel (%p322) target = $region28
        $region27: #{tpu_custom_call.1} parent=11 // pred_region
          _
        $region28: #{tpu_custom_call.1} parent=11 // pred_fallthru
          _
        // Predicated region
        $region29: #{tpu_custom_call.1} parent=11 // pred_check
          %p325 = pneg %p193
        $region30: #{tpu_custom_call.1} parent=11 // pred_check_branch
          %327 = sbr.rel (%p325) target = $region32
        $region31: #{tpu_custom_call.1} parent=11 // pred_region
          _
        $region32: #{tpu_custom_call.1} parent=11 // pred_fallthru
          _
        // Predicated region
        $region33: #{tpu_custom_call.1} parent=11 // pred_check
          %p328 = pneg %p214
        $region34: #{tpu_custom_call.1} parent=11 // pred_check_branch
          %330 = sbr.rel (%p328) target = $region36
        $region35: #{tpu_custom_call.1} parent=11 // pred_region
          _
        $region36: #{tpu_custom_call.1} parent=11 // pred_fallthru
          _
      $region12: #{tpu_custom_call.1} parent=5 // pred_fallthru
        _
      %p331 = scmp.lt.s32.totalorder %s20, 2
      // Predicated region
      $region37: #{tpu_custom_call.1} parent=5 // pred_check
        %p332 = pneg %p331
      $region38: #{tpu_custom_call.1} parent=5 // pred_check_branch
        %334 = sbr.rel (%p332) target = $region40
      $region39: #{tpu_custom_call.1} parent=5 // pred_region
        // Predicated region
        $region41: #{tpu_custom_call.1} parent=39 // pred_check
          %p335 = pneg %p54
        $region42: #{tpu_custom_call.1} parent=39 // pred_check_branch
          %337 = sbr.rel (%p335) target = $region44
        $region43: #{tpu_custom_call.1} parent=39 // pred_region
          %s338 = smul.u32 2, %s28
          %p339 = scmp.lt.s32.totalorder %s27, 1
          %s340 = scalar_select %p339, %s27, 1
          %p341 = scmp.lt.s32.totalorder %s338, 1
          %s342 = scalar_select %p341, %s338, 1
          %s343 = smul.addr %s340, 2
          %s344 = sadd.s32 %s342, %s343
          %s345 = smul.addr %s344, 4
          %s346 = scalar_lea.vmem %s0, %s345
          %s347 = smul.u32 2, %s28
        $region44: #{tpu_custom_call.1} parent=39 // pred_fallthru
          _
        // Predicated region
        $region45: #{tpu_custom_call.1} parent=39 // pred_check
          %p348 = pneg %p82
        $region46: #{tpu_custom_call.1} parent=39 // pred_check_branch
          %350 = sbr.rel (%p348) target = $region48
        $region47: #{tpu_custom_call.1} parent=39 // pred_region
          %s351 = smul.u32 2, %s28
          %p352 = scmp.lt.s32.totalorder %s27, 1
          %s353 = scalar_select %p352, %s27, 1
          %p354 = scmp.lt.s32.totalorder %s351, 1
          %s355 = scalar_select %p354, %s351, 1
          %s356 = smul.addr %s353, 2
          %s357 = sadd.s32 %s355, %s356
          %s358 = smul.addr %s357, 8
          %s359 = scalar_lea.vmem %s1, %s358
          %s360 = smul.u32 2, %s28
        $region48: #{tpu_custom_call.1} parent=39 // pred_fallthru
          _
      $region40: #{tpu_custom_call.1} parent=5 // pred_fallthru
        _
      %p361 = scmp.le.s32.totalorder 1, %s20
      %p362 = scmp.lt.s32.totalorder %s20, 3
      %p363 = pnand %p361, %p362
      %p364 = pneg %p363
      // Predicated region
      $region49: #{tpu_custom_call.1} parent=5 // pred_check
        _
      $region50: #{tpu_custom_call.1} parent=5 // pred_check_branch
        %366 = sbr.rel (%p363) target = $region52
      $region51: #{tpu_custom_call.1} parent=5 // pred_region
        %s367 = ssub.s32 %s20, 1
        %s368 = smul.u32 2, %s30
        %p369 = scmp.lt.s32.totalorder %s29, 1
        %s370 = scalar_select %p369, %s29, 1
        %p371 = scmp.lt.s32.totalorder %s368, 1
        %s372 = scalar_select %p371, %s368, 1
        %s373 = smul.addr %s370, 2
        %s374 = sadd.s32 %s372, %s373
        %s375 = smul.addr %s374, 4
        %s376 = scalar_lea.vmem %s0, %s375
        %p377 = pneg %p60
        %p378 = pneg %p57
        %s379 = smul.u32 2, %s30
        %p380 = scmp.lt.s32.totalorder %s29, 1
        %s381 = scalar_select %p380, %s29, 1
        %p382 = scmp.lt.s32.totalorder %s379, 1
        %s383 = scalar_select %p382, %s379, 1
        %s384 = smul.addr %s381, 2
        %s385 = sadd.s32 %s383, %s384
        %s386 = smul.addr %s385, 8
        %s387 = scalar_lea.vmem %s1, %s386
        %p388 = pneg %p88
        %p389 = pneg %p85
        %p390 = pneg %p109
        %p391 = pneg %p106
        %p392 = pneg %p130
        %p393 = pneg %p127
        %p394 = pneg %p151
        %p395 = pneg %p148
        %p396 = pneg %p172
        %p397 = pneg %p169
        %p398 = pneg %p193
        %p399 = pneg %p190
        %p400 = pneg %p214
        %p401 = pneg %p211
        %p402 = pneg %p242
        %p403 = pneg %p239
        %s404 = sand.u32 %s229, 1
        %s405 = scalar_lea.sflag [#allocation3], %s404
        %s406 = sand.u32 %s229, 1
        %s407 = smul.addr %s406, 16
        %s408 = scalar_lea.vmem [#allocation2], %s407
        %p409 = pneg %p270
        %p410 = pneg %p267
        %p411 = scmp.lt.s32.totalorder %s29, 1
        %s412 = scalar_select %p411, %s29, 1
        %p413 = scmp.lt.s32.totalorder %s30, 0
        %s414 = scalar_select %p413, %s30, 0
        %s415 = sadd.s32 %s414, %s412
        %s416 = scalar_lea.vmem %s9, %s415
        %p417 = pneg %p298
        %p418 = pneg %p295
        %p419 = scmp.lt.s32.totalorder %s29, 1
        %s420 = scalar_select %p419, %s29, 1
        %p421 = scmp.lt.s32.totalorder %s30, 0
        %s422 = scalar_select %p421, %s30, 0
        %s423 = sadd.s32 %s422, %s420
        %s424 = scalar_lea.vmem %s10, %s423
        %s425 = smul.u32 2, %s30
        %p426 = scmp.lt.s32.totalorder %s29, 1
        %s427 = scalar_select %p426, %s29, 1
        %p428 = scmp.lt.s32.totalorder %s425, 1
        %s429 = scalar_select %p428, %s425, 1
        %s430 = smul.addr %s427, 2
        %s431 = sadd.s32 %s429, %s430
        %s432 = smul.addr %s431, 4
        %s433 = scalar_lea.vmem %s0, %s432
        %s434 = smul.u32 2, %s30
        %s435 = smul.u32 2, %s30
        %p436 = scmp.lt.s32.totalorder %s29, 1
        %s437 = scalar_select %p436, %s29, 1
        %p438 = scmp.lt.s32.totalorder %s435, 1
        %s439 = scalar_select %p438, %s435, 1
        %s440 = smul.addr %s437, 2
        %s441 = sadd.s32 %s439, %s440
        %s442 = smul.addr %s441, 8
        %s443 = scalar_lea.vmem %s1, %s442
        %s444 = smul.u32 2, %s30
        %s445 = smul.u32 2, %s30
        %p446 = scmp.lt.s32.totalorder %s29, 1
        %s447 = scalar_select %p446, %s29, 1
        %p448 = scmp.lt.s32.totalorder %s30, 0
        %s449 = scalar_select %p448, %s30, 0
        %s450 = sadd.s32 %s449, %s447
        %s451 = scalar_lea.vmem %s9, %s450
        %p452 = scmp.lt.s32.totalorder %s29, 1
        %s453 = scalar_select %p452, %s29, 1
        %p454 = scmp.lt.s32.totalorder %s30, 0
        %s455 = scalar_select %p454, %s30, 0
        %s456 = sadd.s32 %s455, %s453
        %s457 = scalar_lea.vmem %s10, %s456
        %v458 = vld [vmem:[%s433] sm:$0xff]
        %v459 = vld [vmem:[%s443] sm:$0xff]
        %v460 = vld [vmem:[%s443 + $0x8] sm:$0xff]
        %v461 = vld [vmem:[%s2] sm:$0xff]
        %v462 = vld [vmem:[%s2 + $0x8] sm:$0xff]
        %v463 = vld [vmem:[%s3] sm:$0xff]
        %v464 = vld [vmem:[%s3 + $0x8] sm:$0xff]
        %466 = vset.pattern.permute.xlu0 0
        %467 = vperm.xlu0 %466, %v463
        %v468 = vpop.permute.xlu0 %467
        %471 = vset.pattern.permute.xlu0 0
        %472 = vperm.xlu0 %471, %v464
        %v473 = vpop.permute.xlu0 %472
        %v476 = vcombine.high %v458, %v458
        %vm477 = vcmask 31744
        %v479 = vsel %vm477, %v461, 0
        %v482 = vsel %vm477, %v462, 0
        %vm484 = vcmask 1043456
        %v485 = vsel %vm484, %v458, 0
        %v487 = vsel %vm484, %v476, 0
        %489 = vmatprep.subr.mxu0 %v487
        %490 = vmatpush1.msra.mxu0 %v485
        %491 = vmatprep.subr.mxu0 0.0
        %492 = vmatpush1.msra.mxu0 0.0
        %493 = vmatprep.subr.mxu0 0.0
        %494 = vmatpush1.msra.mxu0 0.0
        %495 = vmatprep.subr.mxu0 0.0
        %496 = vmatpush1.msra.mxu0 0.0
        %497 = vmatprep.subr.mxu0 0.0
        %498 = vmatpush1.msra.mxu0 0.0
        %499 = vmatprep.subr.mxu0 0.0
        %500 = vmatpush1.msra.mxu0 0.0
        %501 = vmatprep.subr.mxu0 0.0
        %502 = vmatpush1.msra.mxu0 0.0
        %503 = vmatprep.subr.mxu0 0.0
        %504 = vmatpush1.msra.mxu0 0.0
        %505 = vmatprep.subr.mxu0 0.0
        %506 = vmatpush1.msra.mxu0 0.0
        %507 = vmatprep.subr.mxu0 0.0
        %508 = vmatpush1.msra.mxu0 0.0
        %509 = vmatprep.subr.mxu0 0.0
        %510 = vmatpush1.msra.mxu0 0.0
        %511 = vmatprep.subr.mxu0 0.0
        %512 = vmatpush1.msra.mxu0 0.0
        %513 = vmatprep.subr.mxu0 0.0
        %514 = vmatpush1.msra.mxu0 0.0
        %515 = vmatprep.subr.mxu0 0.0
        %516 = vmatpush1.msra.mxu0 0.0
        %517 = vmatprep.subr.mxu0 0.0
        %518 = vmatpush1.msra.mxu0 0.0
        %519 = vmatprep.subr.mxu0 0.0
        %520 = vmatpush1.msra.mxu0 0.0
        %521 = vmatprep.subr.mxu0 0.0
        %522 = vmatpush1.msra.mxu0 0.0
        %523 = vmatprep.subr.mxu0 0.0
        %524 = vmatpush1.msra.mxu0 0.0
        %525 = vmatprep.subr.mxu0 0.0
        %526 = vmatpush1.msra.mxu0 0.0
        %527 = vmatprep.subr.mxu0 0.0
        %528 = vmatpush1.msra.mxu0 0.0
        %529 = vmatprep.subr.mxu0 0.0
        %530 = vmatpush1.msra.mxu0 0.0
        %531 = vmatprep.subr.mxu0 0.0
        %532 = vmatpush1.msra.mxu0 0.0
        %533 = vmatprep.subr.mxu0 0.0
        %534 = vmatpush1.msra.mxu0 0.0
        %535 = vmatprep.subr.mxu0 0.0
        %536 = vmatpush1.msra.mxu0 0.0
        %537 = vmatprep.subr.mxu0 0.0
        %538 = vmatpush1.msra.mxu0 0.0
        %539 = vmatprep.subr.mxu0 0.0
        %540 = vmatpush1.msra.mxu0 0.0
        %541 = vmatprep.subr.mxu0 0.0
        %542 = vmatpush1.msra.mxu0 0.0
        %543 = vmatprep.subr.mxu0 0.0
        %544 = vmatpush1.msra.mxu0 0.0
        %545 = vmatprep.subr.mxu0 0.0
        %546 = vmatpush1.msra.mxu0 0.0
        %547 = vmatprep.subr.mxu0 0.0
        %548 = vmatpush1.msra.mxu0 0.0
        %549 = vmatprep.subr.mxu0 0.0
        %550 = vmatpush1.msra.mxu0 0.0
        %551 = vmatprep.subr.mxu0 0.0
        %552 = vmatpush1.msra.mxu0 0.0
        %553 = vmatprep.mubr.f32.mxu0 0.0
        %554 = vmatmul.mubr.f32.gmra.mrb[0].mxu0 %v479
        %v555 = vpop.f32.mrb[0].mxu0
        %v556 = vadd.f32 %v468, %v555
        %v557 = vpop.f32.mrb[0].mxu0
        %v558 = vadd.f32 %v468, %v557
        %559 = vmatprep.mubr.f32.mxu0 0.0
        %560 = vmatmul.mubr.f32.gmra.mrb[0].mxu0 %v482
        %v561 = vpop.f32.mrb[0].mxu0
        %v562 = vadd.f32 %v473, %v561
        %v563 = vpop.f32.mrb[0].mxu0
        %v564 = vadd.f32 %v473, %v563
        %565 = vdwg.mxu0
        %v566 = vlaneseq
        %v567 = vshrl.u32 %v566, 7
        %v568 = vcvt.s32.f32 %v567
        %vm569 = vcmp.eq.s32.totalorder %v567, 7
        %v570 = vmax.f32 %v562, -5.0
        %v571 = vmax.f32 %v564, -5.0
        %v572 = vmin.f32 %v570, 5.0
        %v573 = vmin.f32 %v571, 5.0
        %v574 = vsub.f32 0.0, %v572
        %v575 = vsub.f32 0.0, %v573
        %v576 = vmul.f32 %v574, 1.442695
        %v577 = vpow.pop %v576
        %v578 = vmul.f32 %v575, 1.442695
        %v579 = vpow.pop %v578
        %v580 = vadd.f32 %v577, 1.0
        %v581 = vadd.f32 %v579, 1.0
        %v582 = vrcp.pop %v580
        %v583 = vmul.f32 1.0, %v582
        %v584 = vrcp.pop %v581
        %v585 = vmul.f32 1.0, %v584
        %v586 = vsel %vm569, 0.0, %v583
        %v587 = vsel %vm569, 0.0, %v585
        %v588 = vsel %vm569, 1.0, %v583
        %v589 = vsel %vm569, 1.0, %v585
        %v590 = vlog2.pop %v588
        %v591 = vmul.f32 %v590, 0.6931472
        %v592 = vlog2.pop %v589
        %v593 = vmul.f32 %v592, 0.6931472
        %v594 = vld [vmem:[%s4] sm:$0xff]
        %vm595 = vcmask 64512
        %v597 = vsel %vm595, %v594, 0
        %599 = vmatprep.subr.mxu0 %v593
        %600 = vmatpush1.msra.mxu0 %v591
        %601 = vmatprep.subr.mxu0 0.0
        %602 = vmatpush1.msra.mxu0 0.0
        %603 = vmatprep.subr.mxu0 0.0
        %604 = vmatpush1.msra.mxu0 0.0
        %605 = vmatprep.subr.mxu0 0.0
        %606 = vmatpush1.msra.mxu0 0.0
        %607 = vmatprep.subr.mxu0 0.0
        %608 = vmatpush1.msra.mxu0 0.0
        %609 = vmatprep.subr.mxu0 0.0
        %610 = vmatpush1.msra.mxu0 0.0
        %611 = vmatprep.subr.mxu0 0.0
        %612 = vmatpush1.msra.mxu0 0.0
        %613 = vmatprep.subr.mxu0 0.0
        %614 = vmatpush1.msra.mxu0 0.0
        %615 = vmatprep.subr.mxu0 0.0
        %616 = vmatpush1.msra.mxu0 0.0
        %617 = vmatprep.subr.mxu0 0.0
        %618 = vmatpush1.msra.mxu0 0.0
        %619 = vmatprep.subr.mxu0 0.0
        %620 = vmatpush1.msra.mxu0 0.0
        %621 = vmatprep.subr.mxu0 0.0
        %622 = vmatpush1.msra.mxu0 0.0
        %623 = vmatprep.subr.mxu0 0.0
        %624 = vmatpush1.msra.mxu0 0.0
        %625 = vmatprep.subr.mxu0 0.0
        %626 = vmatpush1.msra.mxu0 0.0
        %627 = vmatprep.subr.mxu0 0.0
        %628 = vmatpush1.msra.mxu0 0.0
        %629 = vmatprep.subr.mxu0 0.0
        %630 = vmatpush1.msra.mxu0 0.0
        %631 = vmatprep.subr.mxu0 0.0
        %632 = vmatpush1.msra.mxu0 0.0
        %633 = vmatprep.subr.mxu0 0.0
        %634 = vmatpush1.msra.mxu0 0.0
        %635 = vmatprep.subr.mxu0 0.0
        %636 = vmatpush1.msra.mxu0 0.0
        %637 = vmatprep.subr.mxu0 0.0
        %638 = vmatpush1.msra.mxu0 0.0
        %639 = vmatprep.subr.mxu0 0.0
        %640 = vmatpush1.msra.mxu0 0.0
        %641 = vmatprep.subr.mxu0 0.0
        %642 = vmatpush1.msra.mxu0 0.0
        %643 = vmatprep.subr.mxu0 0.0
        %644 = vmatpush1.msra.mxu0 0.0
        %645 = vmatprep.subr.mxu0 0.0
        %646 = vmatpush1.msra.mxu0 0.0
        %647 = vmatprep.subr.mxu0 0.0
        %648 = vmatpush1.msra.mxu0 0.0
        %649 = vmatprep.subr.mxu0 0.0
        %650 = vmatpush1.msra.mxu0 0.0
        %651 = vmatprep.subr.mxu0 0.0
        %652 = vmatpush1.msra.mxu0 0.0
        %653 = vmatprep.subr.mxu0 0.0
        %654 = vmatpush1.msra.mxu0 0.0
        %655 = vmatprep.subr.mxu0 0.0
        %656 = vmatpush1.msra.mxu0 0.0
        %657 = vmatprep.subr.mxu0 0.0
        %658 = vmatpush1.msra.mxu0 0.0
        %659 = vmatprep.subr.mxu0 0.0
        %660 = vmatpush1.msra.mxu0 0.0
        %661 = vmatprep.subr.mxu0 0.0
        %662 = vmatpush1.msra.mxu0 0.0
        %663 = vmatprep.mubr.f32.mxu0 0.0
        %664 = vmatmul.mubr.f32.gmra.mrb[0].mxu0 %v597
        %v665 = vpop.f32.mrb[0].mxu0
        %v666 = vadd.f32 0.0, %v665
        %v667 = vpop.f32.mrb[0].mxu0
        %v668 = vadd.f32 0.0, %v667
        %669 = vdwg.mxu0
        %v670 = vmul.f32 %v666, 1.442695
        %v671 = vpow.pop %v670
        %v672 = vmul.f32 %v668, 1.442695
        %v673 = vpow.pop %v672
        %v674 = vsub.f32 1.0, %v586
        %v675 = vsub.f32 1.0, %v587
        %v676 = vmul.f32 %v671, %v674
        %v677 = vmul.f32 %v673, %v675
        %v678 = vadd.f32 %v676, %v459
        %v679 = vadd.f32 %v677, %v460
        %v680 = vrot.slane %v678, 4
        %v681 = vmax.f32 %v678, %v680
        %v682 = vrot.slane %v681, 2
        %v683 = vmax.f32 %v681, %v682
        %v684 = vrot.slane %v683, 1
        %v685 = vmax.f32 %v683, %v684
        %v686 = vrot.slane %v679, 4
        %v687 = vmax.f32 %v679, %v686
        %v688 = vrot.slane %v687, 2
        %v689 = vmax.f32 %v687, %v688
        %v690 = vrot.slane %v689, 1
        %v691 = vmax.f32 %v689, %v690
        %vm692 = vcmp.eq.f32.partialorder %v678, %v685
        %vm693 = vcmp.eq.f32.partialorder %v679, %v691
        %v694 = vsel %vm692, %v568, 8.0
        %v695 = vsel %vm693, %v568, 8.0
        %v696 = vrot.slane %v694, 4
        %v697 = vmin.f32 %v694, %v696
        %v698 = vrot.slane %v697, 2
        %v699 = vmin.f32 %v697, %v698
        %v700 = vrot.slane %v699, 1
        %v701 = vmin.f32 %v699, %v700
        %v702 = vrot.slane %v695, 4
        %v703 = vmin.f32 %v695, %v702
        %v704 = vrot.slane %v703, 2
        %v705 = vmin.f32 %v703, %v704
        %v706 = vrot.slane %v705, 1
        %v707 = vmin.f32 %v705, %v706
        %vm708 = vcmp.le.f32.partialorder %v568, %v701
        %vm709 = vcmp.le.f32.partialorder %v568, %v707
        %v710 = vsel %vm708, 1, 0
        %v711 = vsel %vm709, 1, 0
        %v712 = vcvt.s32.f32 %v710
        %v713 = vcvt.s32.f32 %v711
        %v714 = vld [vmem:[%s7] sm:$0xff]
        %716 = vset.pattern.permute.xlu0 0
        %717 = vperm.xlu0 %716, %v714
        %v718 = vpop.permute.xlu0 %717
        %v720 = vrcp.pop %v718
        %v721 = vmul.f32 %v676, %v720
        %v722 = vmul.f32 %v677, %v720
        %v723 = vadd.f32 %v721, 1e-08
        %v724 = vadd.f32 %v722, 1e-08
        %v725 = vlog2.pop %v723
        %v726 = vmul.f32 %v725, 0.6931472
        %v727 = vlog2.pop %v724
        %v728 = vmul.f32 %v727, 0.6931472
        %v729 = vmul.f32 %v676, %v726
        %v730 = vmul.f32 %v677, %v728
        %v731 = vadd.f32 %v729, %v730
        %732 = vadd.xlane.f32.xlu0 %v731
        %v733 = vpop.xlane.xlu0 %732
        %v734 = vrot.slane %v733, 4
        %v735 = vadd.f32 %v733, %v734
        %v736 = vrot.slane %v735, 2
        %v737 = vadd.f32 %v735, %v736
        %v738 = vrot.slane %v737, 1
        %v739 = vadd.f32 %v737, %v738
        %v740 = vmul.f32 %v556, %v712
        %v741 = vmul.f32 %v558, %v713
        %v742 = vld [vmem:[%s5] sm:$0xff]
        %v743 = vld [vmem:[%s5 + $0x8] sm:$0xff]
        %v745 = vsel %vm595, %v742, 0
        %v748 = vsel %vm595, %v743, 0
        %750 = vmatprep.subr.mxu0 %v741
        %751 = vmatpush1.msra.mxu0 %v740
        %752 = vmatprep.subr.mxu0 0.0
        %753 = vmatpush1.msra.mxu0 0.0
        %754 = vmatprep.subr.mxu0 0.0
        %755 = vmatpush1.msra.mxu0 0.0
        %756 = vmatprep.subr.mxu0 0.0
        %757 = vmatpush1.msra.mxu0 0.0
        %758 = vmatprep.subr.mxu0 0.0
        %759 = vmatpush1.msra.mxu0 0.0
        %760 = vmatprep.subr.mxu0 0.0
        %761 = vmatpush1.msra.mxu0 0.0
        %762 = vmatprep.subr.mxu0 0.0
        %763 = vmatpush1.msra.mxu0 0.0
        %764 = vmatprep.subr.mxu0 0.0
        %765 = vmatpush1.msra.mxu0 0.0
        %766 = vmatprep.subr.mxu0 0.0
        %767 = vmatpush1.msra.mxu0 0.0
        %768 = vmatprep.subr.mxu0 0.0
        %769 = vmatpush1.msra.mxu0 0.0
        %770 = vmatprep.subr.mxu0 0.0
        %771 = vmatpush1.msra.mxu0 0.0
        %772 = vmatprep.subr.mxu0 0.0
        %773 = vmatpush1.msra.mxu0 0.0
        %774 = vmatprep.subr.mxu0 0.0
        %775 = vmatpush1.msra.mxu0 0.0
        %776 = vmatprep.subr.mxu0 0.0
        %777 = vmatpush1.msra.mxu0 0.0
        %778 = vmatprep.subr.mxu0 0.0
        %779 = vmatpush1.msra.mxu0 0.0
        %780 = vmatprep.subr.mxu0 0.0
        %781 = vmatpush1.msra.mxu0 0.0
        %782 = vmatprep.subr.mxu0 0.0
        %783 = vmatpush1.msra.mxu0 0.0
        %784 = vmatprep.subr.mxu0 0.0
        %785 = vmatpush1.msra.mxu0 0.0
        %786 = vmatprep.subr.mxu0 0.0
        %787 = vmatpush1.msra.mxu0 0.0
        %788 = vmatprep.subr.mxu0 0.0
        %789 = vmatpush1.msra.mxu0 0.0
        %790 = vmatprep.subr.mxu0 0.0
        %791 = vmatpush1.msra.mxu0 0.0
        %792 = vmatprep.subr.mxu0 0.0
        %793 = vmatpush1.msra.mxu0 0.0
        %794 = vmatprep.subr.mxu0 0.0
        %795 = vmatpush1.msra.mxu0 0.0
        %796 = vmatprep.subr.mxu0 0.0
        %797 = vmatpush1.msra.mxu0 0.0
        %798 = vmatprep.subr.mxu0 0.0
        %799 = vmatpush1.msra.mxu0 0.0
        %800 = vmatprep.subr.mxu0 0.0
        %801 = vmatpush1.msra.mxu0 0.0
        %802 = vmatprep.subr.mxu0 0.0
        %803 = vmatpush1.msra.mxu0 0.0
        %804 = vmatprep.subr.mxu0 0.0
        %805 = vmatpush1.msra.mxu0 0.0
        %806 = vmatprep.subr.mxu0 0.0
        %807 = vmatpush1.msra.mxu0 0.0
        %808 = vmatprep.subr.mxu0 0.0
        %809 = vmatpush1.msra.mxu0 0.0
        %810 = vmatprep.subr.mxu0 0.0
        %811 = vmatpush1.msra.mxu0 0.0
        %812 = vmatprep.subr.mxu0 0.0
        %813 = vmatpush1.msra.mxu0 0.0
        %814 = vmatprep.mubr.f32.mxu0 0.0
        %815 = vmatmul.mubr.f32.gmra.mrb[0].mxu0 %v745
        %v816 = vpop.f32.mrb[0].mxu0
        %v817 = vadd.f32 0.0, %v816
        %v818 = vpop.f32.mrb[0].mxu0
        %v819 = vadd.f32 0.0, %v818
        %820 = vmatprep.mubr.f32.mxu0 0.0
        %821 = vmatmul.mubr.f32.gmra.mrb[0].mxu0 %v748
        %v822 = vpop.f32.mrb[0].mxu0
        %v823 = vadd.f32 0.0, %v822
        %v824 = vpop.f32.mrb[0].mxu0
        %v825 = vadd.f32 0.0, %v824
        %826 = vdwg.mxu0
        %v827 = vmul.f32 %v740, %v740
        %v828 = vmul.f32 %v741, %v741
        %v829 = vrot.slane %v827, 4
        %v830 = vadd.f32 %v827, %v829
        %v831 = vrot.slane %v830, 2
        %v832 = vadd.f32 %v830, %v831
        %v833 = vrot.slane %v832, 1
        %v834 = vadd.f32 %v832, %v833
        %v835 = vrot.slane %v828, 4
        %v836 = vadd.f32 %v828, %v835
        %v837 = vrot.slane %v836, 2
        %v838 = vadd.f32 %v836, %v837
        %v839 = vrot.slane %v838, 1
        %v840 = vadd.f32 %v838, %v839
        %v841 = vld [vmem:[%s6] sm:$0xff]
        %v842 = vld [vmem:[%s6 + $0x8] sm:$0xff]
        %844 = vset.pattern.permute.xlu0 0
        %845 = vperm.xlu0 %844, %v841
        %v846 = vpop.permute.xlu0 %845
        %849 = vset.pattern.permute.xlu0 0
        %850 = vperm.xlu0 %849, %v842
        %v851 = vpop.permute.xlu0 %850
        %v853 = vadd.f32 %v834, %v846
        %v854 = vadd.f32 %v840, %v846
        %v855 = vadd.f32 %v834, %v851
        %v856 = vadd.f32 %v840, %v851
        %v857 = vmul.f32 %v817, 2.0
        %v858 = vmul.f32 %v819, 2.0
        %v859 = vmul.f32 %v823, 2.0
        %v860 = vmul.f32 %v825, 2.0
        %v861 = vsub.f32 %v853, %v857
        %v862 = vsub.f32 %v854, %v858
        %v863 = vsub.f32 %v855, %v859
        %v864 = vsub.f32 %v856, %v860
        %v865 = vadd.s32 %v567, 8
        %v866 = vcvt.s32.f32 %v865
        %v867 = vmin.f32 %v861, %v863
        %v868 = vrot.slane %v867, 4
        %v869 = vmin.f32 %v867, %v868
        %v870 = vrot.slane %v869, 2
        %v871 = vmin.f32 %v869, %v870
        %v872 = vrot.slane %v871, 1
        %v873 = vmin.f32 %v871, %v872
        %v874 = vmin.f32 %v862, %v864
        %v875 = vrot.slane %v874, 4
        %v876 = vmin.f32 %v874, %v875
        %v877 = vrot.slane %v876, 2
        %v878 = vmin.f32 %v876, %v877
        %v879 = vrot.slane %v878, 1
        %v880 = vmin.f32 %v878, %v879
        %vm881 = vcmp.eq.f32.partialorder %v861, %v873
        %vm882 = vcmp.eq.f32.partialorder %v862, %v880
        %vm883 = vcmp.eq.f32.partialorder %v863, %v873
        %vm884 = vcmp.eq.f32.partialorder %v864, %v880
        %v885 = vsel %vm881, %v568, 16.0
        %v886 = vsel %vm882, %v568, 16.0
        %v887 = vsel %vm883, %v866, 16.0
        %v888 = vsel %vm884, %v866, 16.0
        %v889 = vmin.f32 %v885, %v887
        %v890 = vrot.slane %v889, 4
        %v891 = vmin.f32 %v889, %v890
        %v892 = vrot.slane %v891, 2
        %v893 = vmin.f32 %v891, %v892
        %v894 = vrot.slane %v893, 1
        %v895 = vmin.f32 %v893, %v894
        %v896 = vmin.f32 %v886, %v888
        %v897 = vrot.slane %v896, 4
        %v898 = vmin.f32 %v896, %v897
        %v899 = vrot.slane %v898, 2
        %v900 = vmin.f32 %v898, %v899
        %v901 = vrot.slane %v900, 1
        %v902 = vmin.f32 %v900, %v901
        %vm903 = vcmp.eq.f32.partialorder %v568, %v895
        %vm904 = vcmp.eq.f32.partialorder %v568, %v902
        %vm905 = vcmp.eq.f32.partialorder %v866, %v895
        %vm906 = vcmp.eq.f32.partialorder %v866, %v902
        %v907 = vsel %vm903, 1, 0
        %v908 = vsel %vm904, 1, 0
        %v909 = vsel %vm905, 1, 0
        %v910 = vsel %vm906, 1, 0
        %v911 = vcvt.s32.f32 %v907
        %v912 = vcvt.s32.f32 %v908
        %v913 = vcvt.s32.f32 %v909
        %v914 = vcvt.s32.f32 %v910
        %915 = vxpose.xlu0.b32.start [1/16] %v742, 128
        %916 = vxpose.xlu0.b32.cont [2/16] %v743, 128
        %917 = vxpose.xlu0.b32.cont [3/16] 0.0, 128
        %918 = vxpose.xlu0.b32.cont [4/16] 0.0, 128
        %919 = vxpose.xlu0.b32.cont [5/16] 0.0, 128
        %920 = vxpose.xlu0.b32.cont [6/16] 0.0, 128
        %921 = vxpose.xlu0.b32.cont [7/16] 0.0, 128
        %922 = vxpose.xlu0.b32.cont [8/16] 0.0, 128
        %923 = vxpose.xlu0.b32.cont [9/16] 0.0, 128
        %924 = vxpose.xlu0.b32.cont [10/16] 0.0, 128
        %925 = vxpose.xlu0.b32.cont [11/16] 0.0, 128
        %926 = vxpose.xlu0.b32.cont [12/16] 0.0, 128
        %927 = vxpose.xlu0.b32.cont [13/16] 0.0, 128
        %928 = vxpose.xlu0.b32.cont [14/16] 0.0, 128
        %929 = vxpose.xlu0.b32.cont [15/16] 0.0, 128
        %930 = vxpose.xlu0.b32.end [16/16] 0.0, 128
        %v931 = vpop.trf.xlu0
        %v932 = vpop.trf.xlu0
        %v933 = vpop.trf.xlu0
        %v934 = vpop.trf.xlu0
        %v935 = vpop.trf.xlu0
        %v936 = vpop.trf.xlu0
        %v937 = vpop.trf.xlu0
        %v938 = vpop.trf.xlu0
        %v939 = vpop.trf.xlu0
        %v940 = vpop.trf.xlu0
        %v941 = vpop.trf.xlu0
        %v942 = vpop.trf.xlu0
        %v943 = vpop.trf.xlu0
        %v944 = vpop.trf.xlu0
        %v945 = vpop.trf.xlu0
        %v946 = vpop.trf.xlu0
        %vm947 = vcmask 130048
        %v949 = vsel %vm947, %v931, 0
        %951 = vmatprep.subr.mxu0 %v912
        %952 = vmatpush1.msra.mxu0 %v911
        %953 = vmatprep.subr.mxu0 %v914
        %954 = vmatpush1.msra.mxu0 %v913
        %955 = vmatprep.subr.mxu0 0.0
        %956 = vmatpush1.msra.mxu0 0.0
        %957 = vmatprep.subr.mxu0 0.0
        %958 = vmatpush1.msra.mxu0 0.0
        %959 = vmatprep.subr.mxu0 0.0
        %960 = vmatpush1.msra.mxu0 0.0
        %961 = vmatprep.subr.mxu0 0.0
        %962 = vmatpush1.msra.mxu0 0.0
        %963 = vmatprep.subr.mxu0 0.0
        %964 = vmatpush1.msra.mxu0 0.0
        %965 = vmatprep.subr.mxu0 0.0
        %966 = vmatpush1.msra.mxu0 0.0
        %967 = vmatprep.subr.mxu0 0.0
        %968 = vmatpush1.msra.mxu0 0.0
        %969 = vmatprep.subr.mxu0 0.0
        %970 = vmatpush1.msra.mxu0 0.0
        %971 = vmatprep.subr.mxu0 0.0
        %972 = vmatpush1.msra.mxu0 0.0
        %973 = vmatprep.subr.mxu0 0.0
        %974 = vmatpush1.msra.mxu0 0.0
        %975 = vmatprep.subr.mxu0 0.0
        %976 = vmatpush1.msra.mxu0 0.0
        %977 = vmatprep.subr.mxu0 0.0
        %978 = vmatpush1.msra.mxu0 0.0
        %979 = vmatprep.subr.mxu0 0.0
        %980 = vmatpush1.msra.mxu0 0.0
        %981 = vmatprep.subr.mxu0 0.0
        %982 = vmatpush1.msra.mxu0 0.0
        %983 = vmatprep.subr.mxu0 0.0
        %984 = vmatpush1.msra.mxu0 0.0
        %985 = vmatprep.subr.mxu0 0.0
        %986 = vmatpush1.msra.mxu0 0.0
        %987 = vmatprep.subr.mxu0 0.0
        %988 = vmatpush1.msra.mxu0 0.0
        %989 = vmatprep.subr.mxu0 0.0
        %990 = vmatpush1.msra.mxu0 0.0
        %991 = vmatprep.subr.mxu0 0.0
        %992 = vmatpush1.msra.mxu0 0.0
        %993 = vmatprep.subr.mxu0 0.0
        %994 = vmatpush1.msra.mxu0 0.0
        %995 = vmatprep.subr.mxu0 0.0
        %996 = vmatpush1.msra.mxu0 0.0
        %997 = vmatprep.subr.mxu0 0.0
        %998 = vmatpush1.msra.mxu0 0.0
        %999 = vmatprep.subr.mxu0 0.0
        %1000 = vmatpush1.msra.mxu0 0.0
        %1001 = vmatprep.subr.mxu0 0.0
        %1002 = vmatpush1.msra.mxu0 0.0
        %1003 = vmatprep.subr.mxu0 0.0
        %1004 = vmatpush1.msra.mxu0 0.0
        %1005 = vmatprep.subr.mxu0 0.0
        %1006 = vmatpush1.msra.mxu0 0.0
        %1007 = vmatprep.subr.mxu0 0.0
        %1008 = vmatpush1.msra.mxu0 0.0
        %1009 = vmatprep.subr.mxu0 0.0
        %1010 = vmatpush1.msra.mxu0 0.0
        %1011 = vmatprep.subr.mxu0 0.0
        %1012 = vmatpush1.msra.mxu0 0.0
        %1013 = vmatprep.subr.mxu0 0.0
        %1014 = vmatpush1.msra.mxu0 0.0
        %1015 = vmatprep.mubr.f32.mxu0 0.0
        %1016 = vmatmul.mubr.f32.gmra.mrb[0].mxu0 %v949
        %v1017 = vpop.f32.mrb[0].mxu0
        %v1018 = vadd.f32 0.0, %v1017
        %v1019 = vpop.f32.mrb[0].mxu0
        %v1020 = vadd.f32 0.0, %v1019
        %1021 = vdwg.mxu0
        %v1022 = vsub.f32 %v1018, %v740
        %v1023 = vsub.f32 %v1020, %v741
        %1024 = vst [vmem:[%s408] sm:$0xff] %v1018
        %1025 = vst [vmem:[%s408 + $0x8] sm:$0xff] %v1020
        %vm1026 = vcmask 0
        %1027 = vst.msk [vmem:[%s451] sm:$0x1] %vm1026, %v739
        %v1028 = vmul.f32 %v1022, %v1022
        %v1029 = vmul.f32 %v1023, %v1023
        %v1030 = vadd.f32 %v1028, %v1029
        %1031 = vadd.xlane.f32.xlu0 %v1030
        %v1032 = vpop.xlane.xlu0 %1031
        %v1033 = vrot.slane %v1032, 4
        %v1034 = vadd.f32 %v1032, %v1033
        %v1035 = vrot.slane %v1034, 2
        %v1036 = vadd.f32 %v1034, %v1035
        %v1037 = vrot.slane %v1036, 1
        %v1038 = vadd.f32 %v1036, %v1037
        %1039 = vst.msk [vmem:[%s457] sm:$0x1] %vm1026, %v1038
        %s1040 = sand.u32 %s229, 1
        %s1041 = scalar_lea.sflag [#allocation3], %s1040
        %s1042 = sand.u32 %s229, 1
        %s1043 = smul.addr %s1042, 16
        %s1044 = scalar_lea.vmem [#allocation2], %s1043
        %p1045 = scmp.lt.s32.totalorder %s29, 1
        %s1046 = scalar_select %p1045, %s29, 1
        %p1047 = scmp.lt.s32.totalorder %s30, 0
        %s1048 = scalar_select %p1047, %s30, 0
        %s1049 = sadd.s32 %s1048, %s1046
        %s1050 = scalar_lea.vmem %s9, %s1049
        %p1051 = scmp.lt.s32.totalorder %s29, 1
        %s1052 = scalar_select %p1051, %s29, 1
        %p1053 = scmp.lt.s32.totalorder %s30, 0
        %s1054 = scalar_select %p1053, %s30, 0
        %s1055 = sadd.s32 %s1054, %s1052
        %s1056 = scalar_lea.vmem %s10, %s1055
        // Predicated region
        $region53: #{tpu_custom_call.1} parent=51 // pred_check
          %p1057 = pneg %p239
        $region54: #{tpu_custom_call.1} parent=51 // pred_check_branch
          %1059 = sbr.rel (%p1057) target = $region56
        $region55: #{tpu_custom_call.1} parent=51 // pred_region
          %s1060 = smul.u32 2, %s30
          %s1062 = ssub.s32 256, 256
          %1063 = vsyncadd %s1041, %s1062
          %s1064 = smul.addr %s29, 2
          %s1065 = sadd.s32 %s1060, %s1064
          %s1066 = smul.addr %s1065, 128
          %s1067 = scalar_lea.hbm %s8, %s1066
          %s1069 = sshll.u32 %s1044, 4
          %s1070 = int_to_ptr.vmem [resolvable:$true] %s1069
          %1072 = dma.vmem_to_hbm [thread:$0]  %s1070, 256, %s1067, %s1041
        $region56: #{tpu_custom_call.1} parent=51 // pred_fallthru
          _
        // Predicated region
        $region57: #{tpu_custom_call.1} parent=51 // pred_check
          %p1073 = pneg %p267
        $region58: #{tpu_custom_call.1} parent=51 // pred_check_branch
          %1075 = sbr.rel (%p1073) target = $region60
        $region59: #{tpu_custom_call.1} parent=51 // pred_region
          _
        $region60: #{tpu_custom_call.1} parent=51 // pred_fallthru
          _
        // Predicated region
        $region61: #{tpu_custom_call.1} parent=51 // pred_check
          %p1076 = pneg %p295
        $region62: #{tpu_custom_call.1} parent=51 // pred_check_branch
          %1078 = sbr.rel (%p1076) target = $region64
        $region63: #{tpu_custom_call.1} parent=51 // pred_region
          _
        $region64: #{tpu_custom_call.1} parent=51 // pred_fallthru
          _
      $region52: #{tpu_custom_call.1} parent=5 // pred_fallthru
        _
      %p1079 = scmp.le.s32.totalorder 2, %s20
      // Predicated region
      $region65: #{tpu_custom_call.1} parent=5 // pred_check
        %p1080 = pneg %p1079
      $region66: #{tpu_custom_call.1} parent=5 // pred_check_branch
        %1082 = sbr.rel (%p1080) target = $region68
      $region67: #{tpu_custom_call.1} parent=5 // pred_region
        %s1083 = ssub.s32 %s20, 2
        // Predicated region
        $region69: #{tpu_custom_call.1} parent=67 // pred_check
          %p1084 = pneg %p245
        $region70: #{tpu_custom_call.1} parent=67 // pred_check_branch
          %1086 = sbr.rel (%p1084) target = $region72
        $region71: #{tpu_custom_call.1} parent=67 // pred_region
          %s1087 = sand.u32 %s230, 1
          %s1088 = scalar_lea.sflag [#allocation3], %s1087
          %s1089 = sand.u32 %s230, 1
          %s1090 = smul.addr %s1089, 16
          %s1091 = scalar_lea.vmem [#allocation2], %s1090
          %1092 = dma.done %s1088, 256
        $region72: #{tpu_custom_call.1} parent=67 // pred_fallthru
          _
        // Predicated region
        $region73: #{tpu_custom_call.1} parent=67 // pred_check
          %p1093 = pneg %p273
        $region74: #{tpu_custom_call.1} parent=67 // pred_check_branch
          %1095 = sbr.rel (%p1093) target = $region76
        $region75: #{tpu_custom_call.1} parent=67 // pred_region
          %p1096 = scmp.lt.s32.totalorder %s31, 1
          %s1097 = scalar_select %p1096, %s31, 1
          %p1098 = scmp.lt.s32.totalorder %s32, 0
          %s1099 = scalar_select %p1098, %s32, 0
          %s1100 = sadd.s32 %s1099, %s1097
          %s1101 = scalar_lea.vmem %s9, %s1100
        $region76: #{tpu_custom_call.1} parent=67 // pred_fallthru
          _
        // Predicated region
        $region77: #{tpu_custom_call.1} parent=67 // pred_check
          %p1102 = pneg %p301
        $region78: #{tpu_custom_call.1} parent=67 // pred_check_branch
          %1104 = sbr.rel (%p1102) target = $region80
        $region79: #{tpu_custom_call.1} parent=67 // pred_region
          %p1105 = scmp.lt.s32.totalorder %s31, 1
          %s1106 = scalar_select %p1105, %s31, 1
          %p1107 = scmp.lt.s32.totalorder %s32, 0
          %s1108 = scalar_select %p1107, %s32, 0
          %s1109 = sadd.s32 %s1108, %s1106
          %s1110 = scalar_lea.vmem %s10, %s1109
        $region80: #{tpu_custom_call.1} parent=67 // pred_fallthru
          _
      $region68: #{tpu_custom_call.1} parent=5 // pred_fallthru
        _
    $region6: #{tpu_custom_call.1} parent=1 // loop_footer
      %s24 = sadd.s32 1, %s20
    $region7: #{tpu_custom_call.1} parent=1 // loop_footer_branch
      %19 = sbr.rel target = $region3
    $region8: #{tpu_custom_call.1} parent=1 // loop_exit
      _
    %1111 = vsyncpa [#allocation3], 1
    %s1112 = scalar_lea.sflag [#allocation3], 1
    %1113 = vsyncpa %s1112, 1

</llo_original>
